<compile_context>
chip_gen: v5e
topology: v5e:2x2
jax: 0.10.0
libtpu: 0.0.40
codegen_flags: <defaults>
</compile_context>

<pallas_src>
import functools
import math

import jax
import jax.numpy as jnp
from jax.experimental import pallas as pl
from jax.experimental.pallas import tpu as pltpu

_EPS = 1e-5
_LANE = 128
_COLLAPSE_BYTES = 1 << 20        # single grid step only for trivially small problems


def _cdiv(a, b):
    return -(-a // b)


def _round_up(x, m):
    return _cdiv(x, m) * m


@functools.lru_cache(maxsize=None)
def _device_budgets():
    """(per-step block-size target, scoped VMEM limit) per TPU generation."""
    try:
        kind = jax.devices()[0].device_kind.lower()
    except Exception:
        kind = ""
    if "v7" in kind:
        return 8 << 20, 48 << 20     # 64 MiB physical VMEM on v7x -> leave headroom
    if "v6" in kind:
        return 4 << 20, 64 << 20     # 128 MiB physical VMEM
    return 2 << 20, 32 << 20         # v5e & older / unknown (scoped default 16 MiB)


def _gbn_kernel(x_ref, gamma_ref, beta_ref, o_ref, *, g, chunk, num_chunks, n_rows):
    """One grid step: up to `g` virtual batches x one feature-lane tile.

    Per-virtual-batch mean / biased variance (f32), folded with gamma/beta into
    a single scale/shift FMA.  Looping over virtual batches keeps live f32
    temporaries at ~3 x (chunk, Ct) instead of 3-4x the whole block.
    """
    gamma = gamma_ref[...].astype(jnp.float32)               # (1, Ct)
    beta = beta_ref[...].astype(jnp.float32)                 # (1, Ct)

    base = pl.program_id(0) * g                               # first virtual batch here
    valid = jnp.minimum(g, num_chunks - base)                 # last row-block may be partial
    ragged = (num_chunks * chunk) != n_rows                   # static: torch.chunk ragged tail

    def body(i, carry):
        r0 = i * chunk
        if chunk % 8 == 0:
            r0 = pl.multiple_of(r0, 8)
        xv = x_ref[pl.ds(r0, chunk), :].astype(jnp.float32)   # (chunk, Ct)

        if ragged:
            # Rows of the (globally) last, shorter chunk that fall past N must
            # not contribute to the statistics (jnp.where, not a multiply, so
            # garbage NaN/Inf in the out-of-bounds rows cannot leak in).
            row = jax.lax.broadcasted_iota(jnp.int32, (chunk, 1), 0)
            nrem = n_rows - (base + i) * chunk
            xs = jnp.where(row < nrem, xv, 0.0)
            inv_n = 1.0 / jnp.minimum(nrem, chunk).astype(jnp.float32)
        else:
            xs = xv
            inv_n = jnp.float32(1.0 / chunk)

        # One-pass stats: var = E[x^2] - E[x]^2 (f32 accumulation; clamped >= 0
        # to guard cancellation when |mean| >> std).  Row reductions run on the
        # XLU; MXU offload (ones @ x) only pays off if a bundle dump shows the
        # VALU slot saturating on v7x, so it is deliberately not done here.
        mean = jnp.sum(xs, axis=0, keepdims=True) * inv_n         # (1, Ct)
        ex2 = jnp.sum(xs * xs, axis=0, keepdims=True) * inv_n     # (1, Ct)
        var = jnp.maximum(ex2 - mean * mean, 0.0)

        scale = gamma * jax.lax.rsqrt(var + _EPS)                 # (1, Ct)
        shift = beta - mean * scale                               # (1, Ct)
        o_ref[pl.ds(r0, chunk), :] = (xv * scale + shift).astype(o_ref.dtype)
        return carry

    jax.lax.fori_loop(0, valid, body, 0)


def _choose_tiles(n, c, num_chunks, chunk, itemsize, target_bytes):
    """Pick (g, c_tile, n_padded).

    g        : virtual batches per grid step (row-block height = g * chunk)
    c_tile   : feature-lane tile (multiple of 128, or the full feature dim)
    n_padded : row count the wrapper must pad x / out to (== n except one corner)
    """
    gmult = 1 if num_chunks == 1 else 8 // math.gcd(chunk, 8)

    # ---- feature tiling: bound block bytes AND the kernel's per-chunk f32 temps.
    c_tile = c
    if c > _LANE:
        cap_block = target_bytes // max(1, gmult * chunk * itemsize)
        cap_temps = (target_bytes // 2) // max(1, chunk * 4)
        max_c = max(_LANE, (min(cap_block, cap_temps) // _LANE) * _LANE)
        if c > max_c:
            c_tile = max_c

    if num_chunks == 1:
        # TODO(synk): a single chunk bigger than VMEM would need a cross-step
        # (two-pass) reduction; TabNet's vbs is small so this is not implemented.
        if n * c_tile * itemsize > _COLLAPSE_BYTES and c_tile == c and c >= 2 * _LANE:
            c_tile = max(_LANE, (_cdiv(c, 2) // _LANE) * _LANE)   # >=2 steps for v7x
        return 1, c_tile, n

    # ---- row grouping.  Legal block heights: multiples of gmult*chunk (so rows
    # % 8 == 0) that do not exceed N, or exactly the (possibly padded) height.
    max_g_legal = ((n // chunk) // gmult) * gmult
    if max_g_legal == 0:
        # Rare corner: chunk % 8 != 0 and too few chunks for an 8-aligned block.
        # Use one full-height block over row-padded input.
        return num_chunks, c_tile, num_chunks * chunk

    bytes_per_chunk = chunk * c_tile * itemsize
    g = max(1, int(target_bytes // bytes_per_chunk))
    g = max(gmult, (g // gmult) * gmult)
    g = min(g, max_g_legal)

    total_bytes = n * c * itemsize
    row_steps = _cdiv(num_chunks, g)

    # Never collapse a non-trivial problem onto a single grid step.
    if row_steps == 1 and total_bytes > _COLLAPSE_BYTES:
        for cand in (_round_up(_cdiv(num_chunks, 2), gmult),
                     (_cdiv(num_chunks, 2) // gmult) * gmult):
            cand = min(max(cand, gmult), max_g_legal)
            if _cdiv(num_chunks, cand) > 1:
                g = cand
                break
        row_steps = _cdiv(num_chunks, g)

    # Mild preference for an even step count (even split across v7x's 2 TCs).
    c_steps = _cdiv(c, c_tile)
    if row_steps > 1 and (row_steps * c_steps) % 2 == 1:
        g_alt = min(max(_round_up(_cdiv(num_chunks, row_steps + 1), gmult), gmult),
                    max_g_legal)
        if (_cdiv(num_chunks, g_alt) % 2 == 0
                and g_alt * chunk * c_tile * itemsize >= target_bytes // 2):
            g = g_alt

    return g, c_tile, n


@functools.partial(jax.jit, static_argnames=("vbs",))
def gbn_forward(x, gamma, beta, *, vbs=128):
    """Ghost batch norm forward.  x: (N, C); gamma, beta: (C,)."""
    n, c = x.shape
    if n <= vbs:
        num_chunks, chunk = 1, n
    else:
        k = n // vbs                   # torch.chunk(x, N // vbs, 0)
        chunk = _cdiv(n, k)            # rows per chunk (last one may be shorter)
        num_chunks = _cdiv(n, chunk)

    itemsize = jnp.dtype(x.dtype).itemsize
    target_bytes, vmem_limit = _device_budgets()
    g, c_tile, n_pad = _choose_tiles(n, c, num_chunks, chunk, itemsize, target_bytes)

    # Only the rare "ragged chunks that cannot form an 8-row-aligned block"
    # corner pays for a row pad; the common paths stream x unpadded.
    x_in = x if n_pad == n else jnp.pad(x, ((0, n_pad - n), (0, 0)))

    rows = g * chunk
    grid = (_cdiv(num_chunks, g), _cdiv(c, c_tile))

    out = pl.pallas_call(
        functools.partial(_gbn_kernel, g=g, chunk=chunk,
                          num_chunks=num_chunks, n_rows=n),
        out_shape=jax.ShapeDtypeStruct((n_pad, c), x.dtype),
        grid_spec=pltpu.PrefetchScalarGridSpec(
            num_scalar_prefetch=0,
            grid=grid,
            in_specs=[
                pl.BlockSpec((rows, c_tile), lambda i, j: (i, j)),   # x
                pl.BlockSpec((1, c_tile), lambda i, j: (0, j)),      # gamma
                pl.BlockSpec((1, c_tile), lambda i, j: (0, j)),      # beta
            ],
            out_specs=pl.BlockSpec((rows, c_tile), lambda i, j: (i, j)),
        ),
        compiler_params=pltpu.CompilerParams(
            # Both grid axes are independent; "parallel" lets v7x shard them
            # across its two TensorCores (no-op on single-TC v5e/v6e).
            dimension_semantics=("parallel", "parallel"),
            vmem_limit_bytes=vmem_limit,
        ),
    )(x_in, gamma.reshape(1, c), beta.reshape(1, c))

    return out if n_pad == n else out[:n]


def gbn_reference(x, gamma, beta, *, vbs=128):
    """Pure-JAX reference with torch GBN (training-mode BatchNorm1d) semantics."""
    n, c = x.shape
    chunk = n if n <= vbs else _cdiv(n, n // vbs)
    outs = []
    for s in range(0, n, chunk):
        ch = x[s:min(n, s + chunk)].astype(jnp.float32)
        mean = jnp.mean(ch, axis=0, keepdims=True)
        var = jnp.mean((ch - mean) ** 2, axis=0, keepdims=True)
        xhat = (ch - mean) * jax.lax.rsqrt(var + _EPS)
        outs.append((xhat * gamma + beta).astype(x.dtype))
    return jnp.concatenate(outs, axis=0)


if __name__ == "__main__":
    key = jax.random.PRNGKey(0)

    # (N, C, vbs, use_default_affine)
    tests = [
        (16, 32, 128, True),       # N <= vbs: one chunk, narrow C (no padding)
        (256, 32, 64, True),       # 4 chunks, tiny problem -> single grid step
        (192, 48, 64, False),      # 3 chunks, narrow C
        (250, 40, 64, False),      # torch.chunk ragged tail: chunks of 84, 84, 82 rows
        (2176, 128, 128, False),   # 17 chunks (prime) -> partial last row-block
        (1024, 512, 128, False),   # 8 chunks -> >= 2 grid steps
        (256, 2560, 128, False),   # wide C -> feature-lane tiling / partial C block
    ]

    for n, c, vbs, default_affine in tests:
        key, kx, kg, kb = jax.random.split(key, 4)
        x = jax.random.normal(kx, (n, c), dtype=jnp.float32) * 2.0 + 0.5
        if default_affine:
            gamma = jnp.ones((c,), dtype=jnp.float32)   # nn.BatchNorm1d default init
            beta = jnp.zeros((c,), dtype=jnp.float32)
        else:
            gamma = 1.0 + 0.1 * jax.random.normal(kg, (c,), dtype=jnp.float32)
            beta = 0.1 * jax.random.normal(kb, (c,), dtype=jnp.float32)

        out = jax.block_until_ready(gbn_forward(x, gamma, beta, vbs=vbs))
        ref = gbn_reference(x, gamma, beta, vbs=vbs)

        assert out.shape == (n, c), (out.shape, (n, c))
        assert jnp.allclose(out, ref, atol=1e-4, rtol=1e-4), f"mismatch for {(n, c, vbs)}"

    print("KERNEL_OK")
</pallas_src>

<mosaic_0001>
module attributes {stable_mosaic.version = 11 : i64} {
  func.func @_gbn_kernel(%arg0: i32, %arg1: i32, %arg2: memref<16x32xf32, #tpu.memory_space<vmem>>, %arg3: memref<1x32xf32, #tpu.memory_space<vmem>>, %arg4: memref<1x32xf32, #tpu.memory_space<vmem>>, %arg5: memref<16x32xf32, #tpu.memory_space<vmem>>) attributes {dimension_semantics = [#tpu.dimension_semantics<parallel>, #tpu.dimension_semantics<parallel>], iteration_bounds = array<i64: 1, 1>, scalar_prefetch = 0 : i64, scratch_operands = 0 : i64, tpu.core_type = #tpu.core_type<tc>, window_params = [{transform_indices = @transform_0, window_bounds = array<i64: 16, 32>}, {transform_indices = @transform_1, window_bounds = array<i64: 1, 32>}, {transform_indices = @transform_2, window_bounds = array<i64: 1, 32>}, {transform_indices = @transform_3, window_bounds = array<i64: 16, 32>}]} {
    %c0 = arith.constant 0 : index
    %c0_0 = arith.constant 0 : index
    %0 = vector.load %arg3[%c0, %c0_0] : memref<1x32xf32, #tpu.memory_space<vmem>>, vector<1x32xf32>
    %c0_1 = arith.constant 0 : index
    %c0_2 = arith.constant 0 : index
    %1 = vector.load %arg4[%c0_1, %c0_2] : memref<1x32xf32, #tpu.memory_space<vmem>>, vector<1x32xf32>
    %c1_i32 = arith.constant 1 : i32
    %2 = arith.muli %arg0, %c1_i32 : i32
    %c1_i32_3 = arith.constant 1 : i32
    %3 = arith.subi %c1_i32_3, %2 : i32
    %c1_i32_4 = arith.constant 1 : i32
    %4 = arith.minsi %c1_i32_4, %3 : i32
    %c0_i32 = arith.constant 0 : i32
    %c0_i32_5 = arith.constant 0 : i32
    %5 = arith.subi %4, %c0_i32_5 : i32
    %6 = arith.addi %c0_i32_5, %5 : i32
    %c1_i32_6 = arith.constant 1 : i32
    scf.for %arg6 = %c0_i32_5 to %6 step %c1_i32_6  : i32 {
      %c16_i32 = arith.constant 16 : i32
      %7 = arith.muli %arg6, %c16_i32 : i32
      %8 = tpu.assume_multiple %7, 8 : i32
      %9 = arith.index_cast %8 : i32 to index
      %c0_7 = arith.constant 0 : index
      %10 = vector.load %arg2[%9, %c0_7] : memref<16x32xf32, #tpu.memory_space<vmem>>, vector<16x32xf32>
      %cst = arith.constant dense<0.000000e+00> : vector<32xf32>
      %11 = vector.multi_reduction <add>, %10, %cst [0] : vector<16x32xf32> to vector<32xf32>
      %12 = vector.shape_cast %11 : vector<32xf32> to vector<1x32xf32>
      %cst_8 = arith.constant 6.250000e-02 : f32
      %13 = vector.broadcast %cst_8 : f32 to vector<1x32xf32>
      %14 = arith.mulf %12, %13 : vector<1x32xf32>
      %15 = arith.mulf %10, %10 : vector<16x32xf32>
      %cst_9 = arith.constant dense<0.000000e+00> : vector<32xf32>
      %16 = vector.multi_reduction <add>, %15, %cst_9 [0] : vector<16x32xf32> to vector<32xf32>
      %17 = vector.shape_cast %16 : vector<32xf32> to vector<1x32xf32>
      %cst_10 = arith.constant 6.250000e-02 : f32
      %18 = vector.broadcast %cst_10 : f32 to vector<1x32xf32>
      %19 = arith.mulf %17, %18 : vector<1x32xf32>
      %20 = arith.mulf %14, %14 : vector<1x32xf32>
      %21 = arith.subf %19, %20 : vector<1x32xf32>
      %cst_11 = arith.constant 0.000000e+00 : f32
      %22 = vector.broadcast %cst_11 : f32 to vector<1x32xf32>
      %23 = arith.maximumf %21, %22 : vector<1x32xf32>
      %cst_12 = arith.constant 9.99999974E-6 : f32
      %24 = vector.broadcast %cst_12 : f32 to vector<1x32xf32>
      %25 = arith.addf %23, %24 : vector<1x32xf32>
      %26 = math.rsqrt %25 : vector<1x32xf32>
      %27 = arith.mulf %0, %26 : vector<1x32xf32>
      %28 = arith.mulf %14, %27 : vector<1x32xf32>
      %29 = arith.subf %1, %28 : vector<1x32xf32>
      %30 = vector.broadcast %27 : vector<1x32xf32> to vector<16x32xf32>
      %31 = arith.mulf %10, %30 : vector<16x32xf32>
      %32 = vector.broadcast %29 : vector<1x32xf32> to vector<16x32xf32>
      %33 = arith.addf %31, %32 : vector<16x32xf32>
      %34 = arith.index_cast %8 : i32 to index
      %c0_13 = arith.constant 0 : index
      %35 = vector.load %arg5[%34, %c0_13] : memref<16x32xf32, #tpu.memory_space<vmem>>, vector<16x32xf32>
      tpu.vector_store %arg5[%34, %c0_13], %33 {strides = array<i32>} : memref<16x32xf32, #tpu.memory_space<vmem>>, vector<16x32xf32>,
    }
    return
  }
  func.func @transform_0(%arg0: i32, %arg1: i32) -> (i32, i32) {
    %c0_i32 = arith.constant 0 : i32
    return %arg0, %arg1 : i32, i32
  }
  func.func @transform_1(%arg0: i32, %arg1: i32) -> (i32, i32) {
    %c0_i32 = arith.constant 0 : i32
    %c0_i32_0 = arith.constant 0 : i32
    return %c0_i32, %arg1 : i32, i32
  }
  func.func @transform_2(%arg0: i32, %arg1: i32) -> (i32, i32) {
    %c0_i32 = arith.constant 0 : i32
    %c0_i32_0 = arith.constant 0 : i32
    return %c0_i32, %arg1 : i32, i32
  }
  func.func @transform_3(%arg0: i32, %arg1: i32) -> (i32, i32) {
    %c0_i32 = arith.constant 0 : i32
    return %arg0, %arg1 : i32, i32
  }
}

</mosaic_0001>

<llo_original>
// kernel: gbn_forward.1
$region0: #{gbn_forward.1}
  #allocation0 [shape = 'u32[]', space=smem, size = 0x4, offset = 0x4, fixed_abs, tag = 'smem constant byte address 0x4 - core index']
  #allocation1 [shape = 'u32[72,128]{1,0:T(1,128)}', space=vmem, size = 0x9000, scoped, tag = 'internal scratch']
  %s0 = inlined_call_operand.hbm [shape: f32[16,32], index: 0, kind: input, shape index: {}]
  %s1 = inlined_call_operand.vmem [shape: f32[1,32], index: 1, kind: input, shape index: {}]
  %s2 = inlined_call_operand.vmem [shape: f32[1,32], index: 2, kind: input, shape index: {}]
  %s3 = inlined_call_operand.hbm [shape: f32[16,32], index: 3, kind: output, shape index: {}]
  %s4 = sld [smem:[#allocation0]]
  $region33: #{gbn_forward.1} parent=0
    _
  %s6 = ssub.s32 1, %s4
  %s7 = scalar_select 0, %s6, %s4
  $region1: #{gbn_forward.1} parent=0
    #allocation2 [shape = 'u8[8192]{0}', space=vmem, size = 0x2000, scoped, tag = 'input window, operand 0, single buffered']
    #allocation3 [shape = 's32[1]{0}', space=sflag, size = 0x4, scoped, tag = 'scoped memory for gbn_forward.1']
    #allocation4 [shape = 's32[1]{0}', space=sflag, size = 0x4, scoped, tag = 'scoped memory for gbn_forward.1']
    #allocation5 [shape = 'u8[8192]{0}', space=vmem, size = 0x2000, scoped, tag = 'output window, operand 0, single buffered']
    %8 = vsyncpa [#allocation3], 0
    %9 = vsyncpa [#allocation4], 0
    // Predicated region
    $region2: #{gbn_forward.1} parent=1 // pred_check
      _
    $region3: #{gbn_forward.1} parent=1 // pred_check_branch
      %11 = sbr.rel (0) target = $region5
    $region4: #{gbn_forward.1} parent=1 // pred_region
      %13 = vsyncadd [#allocation3], 0
      %s14 = sshll.u32 %s0, 4
      %s15 = int_to_ptr.hbm [resolvable:$true] %s14
      %s16 = sshll.u32 [#allocation2], 4
      %s17 = int_to_ptr.vmem [resolvable:$true] %s16
      %22 = dma.hbm_to_vmem [thread:$0]  %s15, 256, %s17, [#allocation3], 128, 128, 8
    $region5: #{gbn_forward.1} parent=1 // pred_fallthru
      _
    // Predicated region
    $region6: #{gbn_forward.1} parent=1 // pred_check
      _
    $region7: #{gbn_forward.1} parent=1 // pred_check_branch
      %24 = sbr.rel (0) target = $region9
    $region8: #{gbn_forward.1} parent=1 // pred_region
      _
    $region9: #{gbn_forward.1} parent=1 // pred_fallthru
      _
    // Predicated region
    $region10: #{gbn_forward.1} parent=1 // pred_check
      _
    $region11: #{gbn_forward.1} parent=1 // pred_check_branch
      %26 = sbr.rel (0) target = $region13
    $region12: #{gbn_forward.1} parent=1 // pred_region
      _
    $region13: #{gbn_forward.1} parent=1 // pred_fallthru
      _
    // Predicated region
    $region14: #{gbn_forward.1} parent=1 // pred_check
      _
    $region15: #{gbn_forward.1} parent=1 // pred_check_branch
      %28 = sbr.rel (0) target = $region17
    $region16: #{gbn_forward.1} parent=1 // pred_region
      %30 = dma.done [#allocation3], 256
    $region17: #{gbn_forward.1} parent=1 // pred_fallthru
      _
    %v31 = vld [vmem:[%s1] sm:$0x1]
    %v32 = vld [vmem:[%s2] sm:$0x1]
    %s33 = ssub.s32 1, 0
    %p34 = scmp.lt.s32.totalorder %s33, 1
    %s35 = scalar_select %p34, %s33, 1
    // While loop
    $region18: #{gbn_forward.1} parent=1 // loop_pre_header
      _
    $region19: #{gbn_forward.1} parent=1 // loop_header
      %s37 = sphi 0, %s39
      %p38 = scmp.ge.s32.totalorder %s37, %s35
    $region20: #{gbn_forward.1} parent=1 // loop_header_branch
      %41 = sbr.rel (%p38) target = $region24
    $region21: #{gbn_forward.1} parent=1 // loop_body
      %s42 = smul.u32 %s37, 16
      %s43 = scalar_lea.vmem [#allocation2], %s42
      %v44 = vld [vmem:[%s43] sm:$0xff]
      %v45 = vld [vmem:[%s43 + $0x8] sm:$0xff]
      %vm46 = vcmask 261120
      %v47 = vsel %vm46, %v44, 0.0
      %v48 = vsel %vm46, %v45, 0.0
      %v49 = vadd.f32 %v47, %v48
      %v50 = vrot.slane %v49, 4
      %v51 = vadd.f32 %v49, %v50
      %v52 = vrot.slane %v51, 2
      %v53 = vadd.f32 %v51, %v52
      %v54 = vrot.slane %v53, 1
      %v55 = vadd.f32 %v53, %v54
      %v56 = vmul.f32 %v55, 0.0625
      %v57 = vmul.f32 %v44, %v44
      %v58 = vmul.f32 %v45, %v45
      %v59 = vsel %vm46, %v57, 0.0
      %v60 = vsel %vm46, %v58, 0.0
      %v61 = vadd.f32 %v59, %v60
      %v62 = vrot.slane %v61, 4
      %v63 = vadd.f32 %v61, %v62
      %v64 = vrot.slane %v63, 2
      %v65 = vadd.f32 %v63, %v64
      %v66 = vrot.slane %v65, 1
      %v67 = vadd.f32 %v65, %v66
      %v68 = vmul.f32 %v67, 0.0625
      %v69 = vmul.f32 %v56, %v56
      %v70 = vsub.f32 %v68, %v69
      %v71 = vmax.f32 %v70, 0.0
      %v72 = vadd.f32 %v71, 1e-05
      %v73 = vrsqrt.pop %v72
      %v74 = vmul.f32 %v73, %v72
      %v75 = vmul.f32 %v74, %v73
      %v76 = vmul.f32 0.5, %v75
      %v77 = vsub.f32 1.5, %v76
      %v78 = vmul.f32 %v73, %v77
      %vm79 = vweird.f32 %v72
      %vm80 = vweird.f32 %v73
      %vm81 = vmor %vm79, %vm80
      %v82 = vsel %vm81, %v73, %v78
      %v83 = vmul.f32 %v31, %v82
      %v84 = vmul.f32 %v56, %v83
      %v85 = vsub.f32 %v32, %v84
      %v87 = vperm.slane %v83, 0
      %v89 = vmul.f32 %v44, %v87
      %v90 = vmul.f32 %v45, %v87
      %v92 = vperm.slane %v85, 0
      %v94 = vadd.f32 %v89, %v92
      %v95 = vadd.f32 %v90, %v92
      %s96 = scalar_lea.vmem [#allocation5], %s42
      %97 = vst.msk [vmem:[%s96] sm:$0xff] %vm46, %v94
      %98 = vst.msk [vmem:[%s96 + $0x8] sm:$0xff] %vm46, %v95
    $region22: #{gbn_forward.1} parent=1 // loop_footer
      %s39 = sadd.s32 %s37, 1
    $region23: #{gbn_forward.1} parent=1 // loop_footer_branch
      %36 = sbr.rel target = $region19
    $region24: #{gbn_forward.1} parent=1 // loop_exit
      _
    // Predicated region
    $region25: #{gbn_forward.1} parent=1 // pred_check
      _
    $region26: #{gbn_forward.1} parent=1 // pred_check_branch
      %100 = sbr.rel (0) target = $region28
    $region27: #{gbn_forward.1} parent=1 // pred_region
      %102 = vsyncadd [#allocation4], 0
      %s103 = sshll.u32 [#allocation5], 4
      %s104 = int_to_ptr.vmem [resolvable:$true] %s103
      %s105 = sshll.u32 %s3, 4
      %s106 = int_to_ptr.hbm [resolvable:$true] %s105
      %111 = dma.vmem_to_hbm [thread:$0]  %s104, 256, %s106, [#allocation4], 128, 128, 8
    $region28: #{gbn_forward.1} parent=1 // pred_fallthru
      _
    // Predicated region
    $region29: #{gbn_forward.1} parent=1 // pred_check
      _
    $region30: #{gbn_forward.1} parent=1 // pred_check_branch
      %113 = sbr.rel (0) target = $region32
    $region31: #{gbn_forward.1} parent=1 // pred_region
      %115 = dma.done [#allocation4], 256
    $region32: #{gbn_forward.1} parent=1 // pred_fallthru
      _
    %116 = vsyncpa [#allocation3], 1
    %117 = vsyncpa [#allocation4], 1

</llo_original>
